<compile_context>
chip_gen: v7x
topology: tpu7x:2x2x1
jax: 0.10.0
libtpu: 0.0.40
codegen_flags: <defaults>
</compile_context>

<pallas_src>
import math

import jax
import jax.numpy as jnp
from jax.experimental import pallas as pl
from jax.experimental.pallas import tpu as pltpu


def _disc_folded_kernel(x_ref, w_ref, b_ref, o_ref):
    # x_ref: (rows, K)  lane-dense folded batch tile (G samples per folded row)
    # w_ref: (K, G)     block-diagonal fused weight, resident in VMEM
    # b_ref: (1, G)     fused bias (f32), resident in VMEM
    # o_ref: (rows, G)  o[r, g] = discriminator(x[r*G + g])
    y = jnp.dot(x_ref[...], w_ref[...], preferred_element_type=jnp.float32)
    o_ref[...] = (y + b_ref[...]).astype(o_ref.dtype)


def _round_up(v, m):
    return ((v + m - 1) // m) * m


def discriminator_forward(x, w1, b1, w2, b2, *,
                          target_tile_bytes=8 << 20, rows_per_tile=None):
    """Forward pass of Discriminator.

    x:  (B, n_attr)
    w1: (50, n_attr), b1: (50,)   -- first nn.Linear (PyTorch layout)
    w2: (1, 50),      b2: (1,)    -- second nn.Linear (PyTorch layout)
    Returns (B, 1), matching `model(x)` of the PyTorch module.
    """
    B, n_attr = x.shape
    out_dtype = x.dtype

    # ---- algebraic fusion of the two bias-interleaved Linears (wrapper, f32) ----
    #   (x @ W1^T + b1) @ W2^T + b2  ==  x @ (W2 @ W1)^T + (b1 @ W2^T + b2)
    w1f = w1.astype(jnp.float32)
    w2f = w2.astype(jnp.float32)
    w_eff = (w2f @ w1f).reshape(n_attr)                          # (n_attr,) f32
    b_eff = (b1.astype(jnp.float32) @ w2f.T
             + b2.astype(jnp.float32)).reshape(())               # scalar, f32

    # ---- lane folding: G batch rows per folded row, K = G * n_attr lanes ----
    g0 = 128 // math.gcd(n_attr, 128)     # smallest G making K a multiple of 128
    G = g0 * max(1, 32 // g0)             # cap ~32: keeps the block-diag dot mem-bound (v5e)
    K = G * n_attr

    # Block-diagonal fused weight (K, G): w_bd[g*n_attr + a, h] = w_eff[a] * (g == h).
    w_bd = (jnp.eye(G, dtype=jnp.float32)[:, None, :]
            * w_eff[None, :, None]).reshape(K, G)
    w_bd = w_bd.astype(x.dtype)           # homogeneous MXU operands (stays f32 for f32 x)
    b_row = jnp.full((1, G), b_eff, dtype=jnp.float32)

    # ---- fold x: free contiguous reshape; pad only if B is not a multiple of G ----
    b_pad = _round_up(B, G)
    if b_pad != B:
        # Only the (< G)-row tail is semantically padding; callers wanting the
        # fully zero-copy path should supply B % G == 0.
        x = jnp.pad(x, ((0, b_pad - B), (0, 0)))
    R = b_pad // G
    x_folded = x.reshape(R, K)            # row-major merge/split -> no data movement

    # ---- batch tile: ~target_tile_bytes of x per buffer, sublane aligned ----
    itemsize = jnp.dtype(x.dtype).itemsize
    rows_cap = max(8, (int(target_tile_bytes) // (K * itemsize)) // 8 * 8)
    if rows_per_tile is not None:
        rows_cap = max(8, (int(rows_per_tile) // 8) * 8)
    if R <= 8:
        rows_tile = R                     # block == full dim (exact, no ragged block)
    else:
        rows_tile = min(rows_cap, _round_up(R, 8))
    n_tiles = pl.cdiv(R, rows_tile)       # ragged trailing block handled by Pallas

    out2d = pl.pallas_call(
        _disc_folded_kernel,
        out_shape=jax.ShapeDtypeStruct((R, G), out_dtype),
        grid_spec=pltpu.PrefetchScalarGridSpec(
            num_scalar_prefetch=0,
            grid=(n_tiles,),
            in_specs=[
                pl.BlockSpec((rows_tile, K), lambda i: (i, 0)),   # streamed x tile
                pl.BlockSpec((K, G), lambda i: (0, 0)),           # resident fused weight
                pl.BlockSpec((1, G), lambda i: (0, 0)),           # resident fused bias
            ],
            out_specs=pl.BlockSpec((rows_tile, G), lambda i: (i, 0)),
        ),
        compiler_params=pltpu.CompilerParams(
            dimension_semantics=("parallel",),        # megacore-shardable batch tiles
            vmem_limit_bytes=32 * 1024 * 1024,        # 2x ~8 MiB x-buffers + outputs, all gens
        ),
    )(x_folded, w_bd, b_row)

    # (R, G) row-major == padded batch order; free reshape back, drop padding.
    return out2d.reshape(b_pad, 1)[:B]


def init_params(key, n_attr, hidden=50, out_dim=1):
    """Deterministic init mimicking PyTorch Linear default U[-1/sqrt(fan_in), +...]."""
    k1, k2, k3, k4 = jax.random.split(key, 4)
    bound1 = 1.0 / jnp.sqrt(jnp.float32(n_attr))
    bound2 = 1.0 / jnp.sqrt(jnp.float32(hidden))
    w1 = jax.random.uniform(k1, (hidden, n_attr), jnp.float32, -bound1, bound1)
    b1 = jax.random.uniform(k2, (hidden,), jnp.float32, -bound1, bound1)
    w2 = jax.random.uniform(k3, (out_dim, hidden), jnp.float32, -bound2, bound2)
    b2 = jax.random.uniform(k4, (out_dim,), jnp.float32, -bound2, bound2)
    return w1, b1, w2, b2


if __name__ == "__main__":
    key = jax.random.PRNGKey(0)
    kx, kp, kx2, kx3 = jax.random.split(key, 4)

    n_attr = 8
    w1, b1, w2, b2 = init_params(kp, n_attr)

    def ref_fwd(xv):
        # Reference (un-fused, PyTorch semantics). Fusion only reassociates f32 sums.
        return (xv @ w1.T + b1) @ w2.T + b2

    # 1) fold-aligned batch: zero-copy reshape path, single tile.
    x = jax.random.normal(kx, (256, n_attr), jnp.float32)
    out = jax.block_until_ready(discriminator_forward(x, w1, b1, w2, b2))
    assert out.shape == (256, 1)
    assert jnp.allclose(out, ref_fwd(x), atol=1e-4, rtol=1e-4)

    # 2) batch not a multiple of the fold factor: exercises tail padding + slice-off.
    x2 = jax.random.normal(kx2, (1000, n_attr), jnp.float32)
    out2 = jax.block_until_ready(discriminator_forward(x2, w1, b1, w2, b2))
    assert out2.shape == (1000, 1)
    assert jnp.allclose(out2, ref_fwd(x2), atol=1e-4, rtol=1e-4)

    # 3) multiple grid tiles with a ragged trailing block (forced small tile):
    #    B=832 -> 26 folded rows, rows_tile=8 -> grid of 4, last block partially valid.
    x3 = jax.random.normal(kx3, (832, n_attr), jnp.float32)
    out3 = jax.block_until_ready(
        discriminator_forward(x3, w1, b1, w2, b2, rows_per_tile=8))
    assert out3.shape == (832, 1)
    assert jnp.allclose(out3, ref_fwd(x3), atol=1e-4, rtol=1e-4)

    print("KERNEL_OK")
</pallas_src>

<mosaic_0001>
module attributes {stable_mosaic.version = 11 : i64} {
  func.func @_disc_folded_kernel(%arg0: i32, %arg1: memref<8x256xf32, #tpu.memory_space<vmem>>, %arg2: memref<256x32xf32, #tpu.memory_space<vmem>>, %arg3: memref<1x32xf32, #tpu.memory_space<vmem>>, %arg4: memref<8x32xf32, #tpu.memory_space<vmem>>) attributes {dimension_semantics = [#tpu.dimension_semantics<parallel>], iteration_bounds = array<i64: 1>, scalar_prefetch = 0 : i64, scratch_operands = 0 : i64, tpu.core_type = #tpu.core_type<tc>, window_params = [{transform_indices = @transform_0, window_bounds = array<i64: 8, 256>}, {pipeline_mode = #tpu.pipeline_mode<synchronous>, transform_indices = @transform_1, window_bounds = array<i64: 256, 32>}, {pipeline_mode = #tpu.pipeline_mode<synchronous>, transform_indices = @transform_2, window_bounds = array<i64: 1, 32>}, {transform_indices = @transform_3, window_bounds = array<i64: 8, 32>}]} {
    %c0 = arith.constant 0 : index
    %c0_0 = arith.constant 0 : index
    %0 = vector.load %arg1[%c0, %c0_0] : memref<8x256xf32, #tpu.memory_space<vmem>>, vector<8x256xf32>
    %c0_1 = arith.constant 0 : index
    %c0_2 = arith.constant 0 : index
    %1 = vector.load %arg2[%c0_1, %c0_2] : memref<256x32xf32, #tpu.memory_space<vmem>>, vector<256x32xf32>
    %cst = arith.constant dense<0.000000e+00> : vector<8x32xf32>
    %2 = tpu.matmul %0, %1, %cst {dimension_numbers = #tpu.dot_dimension_numbers<[1], [0], [0], [1], [0, 0, 1, 1], [], []>} : vector<8x256xf32>, vector<256x32xf32>, vector<8x32xf32> -> vector<8x32xf32>
    %c0_3 = arith.constant 0 : index
    %c0_4 = arith.constant 0 : index
    %3 = vector.load %arg3[%c0_3, %c0_4] : memref<1x32xf32, #tpu.memory_space<vmem>>, vector<1x32xf32>
    %4 = vector.broadcast %3 : vector<1x32xf32> to vector<8x32xf32>
    %5 = arith.addf %2, %4 : vector<8x32xf32>
    %c0_5 = arith.constant 0 : index
    %c0_6 = arith.constant 0 : index
    %6 = vector.load %arg4[%c0_5, %c0_6] : memref<8x32xf32, #tpu.memory_space<vmem>>, vector<8x32xf32>
    tpu.vector_store %arg4[%c0_5, %c0_6], %5 {strides = array<i32>} : memref<8x32xf32, #tpu.memory_space<vmem>>, vector<8x32xf32>,
    return
  }
  func.func @transform_0(%arg0: i32) -> (i32, i32) {
    %c0_i32 = arith.constant 0 : i32
    %c0_i32_0 = arith.constant 0 : i32
    return %arg0, %c0_i32 : i32, i32
  }
  func.func @transform_1(%arg0: i32) -> (i32, i32) {
    %c0_i32 = arith.constant 0 : i32
    %c0_i32_0 = arith.constant 0 : i32
    %c0_i32_1 = arith.constant 0 : i32
    return %c0_i32, %c0_i32_0 : i32, i32
  }
  func.func @transform_2(%arg0: i32) -> (i32, i32) {
    %c0_i32 = arith.constant 0 : i32
    %c0_i32_0 = arith.constant 0 : i32
    %c0_i32_1 = arith.constant 0 : i32
    return %c0_i32, %c0_i32_0 : i32, i32
  }
  func.func @transform_3(%arg0: i32) -> (i32, i32) {
    %c0_i32 = arith.constant 0 : i32
    %c0_i32_0 = arith.constant 0 : i32
    return %arg0, %c0_i32 : i32, i32
  }
}

</mosaic_0001>

<llo_original>
// kernel: tpu_custom_call.1
$region0: #{tpu_custom_call.1}
  #allocation0 [shape = 'u32[]', space=smem, size = 0x4, offset = 0x4, fixed_abs, tag = 'smem constant byte address 0x4 - core index']
  #allocation1 [shape = 'u32[144,128]{1,0:T(1,128)}', space=vmem, size = 0x12000, scoped, tag = 'internal scratch']
  %s0 = inlined_call_operand.vmem [shape: f32[8,256], index: 0, kind: input, shape index: {}]
  %s1 = inlined_call_operand.vmem [shape: f32[256,32], index: 1, kind: input, shape index: {}]
  %s2 = inlined_call_operand.vmem [shape: f32[1,32], index: 2, kind: input, shape index: {}]
  %s3 = inlined_call_operand.hbm [shape: f32[8,32], index: 3, kind: output, shape index: {}]
  %s4 = sld [smem:[#allocation0]]
  $region22: #{tpu_custom_call.1} parent=0
    _
  %s6 = ssub.s32 1, %s4
  %s7 = scalar_select 0, %s6, %s4
  $region1: #{tpu_custom_call.1} parent=0
    #allocation2 [shape = 'u8[4096]{0}', space=vmem, size = 0x1000, scoped, tag = 'output window, operand 0, single buffered']
    #allocation3 [shape = 's32[1]{0}', space=sflag, size = 0x4, scoped, tag = 'scoped memory for tpu_custom_call.1']
    %8 = vsyncpa [#allocation3], 0
    // Predicated region
    $region2: #{tpu_custom_call.1} parent=1 // pred_check
      _
    $region3: #{tpu_custom_call.1} parent=1 // pred_check_branch
      %10 = sbr.rel (0) target = $region5
    $region4: #{tpu_custom_call.1} parent=1 // pred_region
      _
    $region5: #{tpu_custom_call.1} parent=1 // pred_fallthru
      _
    // Predicated region
    $region6: #{tpu_custom_call.1} parent=1 // pred_check
      _
    $region7: #{tpu_custom_call.1} parent=1 // pred_check_branch
      %12 = sbr.rel (0) target = $region9
    $region8: #{tpu_custom_call.1} parent=1 // pred_region
      _
    $region9: #{tpu_custom_call.1} parent=1 // pred_fallthru
      _
    // Predicated region
    $region10: #{tpu_custom_call.1} parent=1 // pred_check
      _
    $region11: #{tpu_custom_call.1} parent=1 // pred_check_branch
      %14 = sbr.rel (0) target = $region13
    $region12: #{tpu_custom_call.1} parent=1 // pred_region
      _
    $region13: #{tpu_custom_call.1} parent=1 // pred_fallthru
      _
    %v15 = vld [vmem:[%s0] sm:$0xff]
    %v16 = vld [vmem:[%s0 + $0x8] sm:$0xff]
    %v17 = vld [vmem:[%s1] sm:$0xff]
    %v18 = vld [vmem:[%s1 + $0x8] sm:$0xff]
    %v19 = vld [vmem:[%s1 + $0x10] sm:$0xff]
    %v20 = vld [vmem:[%s1 + $0x18] sm:$0xff]
    %v21 = vld [vmem:[%s1 + $0x20] sm:$0xff]
    %v22 = vld [vmem:[%s1 + $0x28] sm:$0xff]
    %v23 = vld [vmem:[%s1 + $0x30] sm:$0xff]
    %v24 = vld [vmem:[%s1 + $0x38] sm:$0xff]
    %v25 = vld [vmem:[%s1 + $0x40] sm:$0xff]
    %v26 = vld [vmem:[%s1 + $0x48] sm:$0xff]
    %v27 = vld [vmem:[%s1 + $0x50] sm:$0xff]
    %v28 = vld [vmem:[%s1 + $0x58] sm:$0xff]
    %v29 = vld [vmem:[%s1 + $0x60] sm:$0xff]
    %v30 = vld [vmem:[%s1 + $0x68] sm:$0xff]
    %v31 = vld [vmem:[%s1 + $0x70] sm:$0xff]
    %v32 = vld [vmem:[%s1 + $0x78] sm:$0xff]
    %v33 = vld [vmem:[%s1 + $0x80] sm:$0xff]
    %v34 = vld [vmem:[%s1 + $0x88] sm:$0xff]
    %v35 = vld [vmem:[%s1 + $0x90] sm:$0xff]
    %v36 = vld [vmem:[%s1 + $0x98] sm:$0xff]
    %v37 = vld [vmem:[%s1 + $0xa0] sm:$0xff]
    %v38 = vld [vmem:[%s1 + $0xa8] sm:$0xff]
    %v39 = vld [vmem:[%s1 + $0xb0] sm:$0xff]
    %v40 = vld [vmem:[%s1 + $0xb8] sm:$0xff]
    %v41 = vld [vmem:[%s1 + $0xc0] sm:$0xff]
    %v42 = vld [vmem:[%s1 + $0xc8] sm:$0xff]
    %v43 = vld [vmem:[%s1 + $0xd0] sm:$0xff]
    %v44 = vld [vmem:[%s1 + $0xd8] sm:$0xff]
    %v45 = vld [vmem:[%s1 + $0xe0] sm:$0xff]
    %v46 = vld [vmem:[%s1 + $0xe8] sm:$0xff]
    %v47 = vld [vmem:[%s1 + $0xf0] sm:$0xff]
    %v48 = vld [vmem:[%s1 + $0xf8] sm:$0xff]
    %v49 = vld [vmem:[%s2] sm:$0x1]
    %v51 = vlaneseq
    %v52 = vshrl.u32 %v51, 7
    %v53 = vsub.s32 0, %v52
    %v54 = vrot.slane %v49, %v53
    %56 = vmatprep.subr.mxu0 0.0
    %57 = vmatpush1.msra.mxu0 %v17
    %58 = vmatprep.subr.mxu0 0.0
    %59 = vmatpush1.msra.mxu0 %v18
    %60 = vmatprep.subr.mxu0 0.0
    %61 = vmatpush1.msra.mxu0 %v19
    %62 = vmatprep.subr.mxu0 0.0
    %63 = vmatpush1.msra.mxu0 %v20
    %64 = vmatprep.subr.mxu0 0.0
    %65 = vmatpush1.msra.mxu0 %v21
    %66 = vmatprep.subr.mxu0 0.0
    %67 = vmatpush1.msra.mxu0 %v22
    %68 = vmatprep.subr.mxu0 0.0
    %69 = vmatpush1.msra.mxu0 %v23
    %70 = vmatprep.subr.mxu0 0.0
    %71 = vmatpush1.msra.mxu0 %v24
    %72 = vmatprep.subr.mxu0 0.0
    %73 = vmatpush1.msra.mxu0 %v25
    %74 = vmatprep.subr.mxu0 0.0
    %75 = vmatpush1.msra.mxu0 %v26
    %76 = vmatprep.subr.mxu0 0.0
    %77 = vmatpush1.msra.mxu0 %v27
    %78 = vmatprep.subr.mxu0 0.0
    %79 = vmatpush1.msra.mxu0 %v28
    %80 = vmatprep.subr.mxu0 0.0
    %81 = vmatpush1.msra.mxu0 %v29
    %82 = vmatprep.subr.mxu0 0.0
    %83 = vmatpush1.msra.mxu0 %v30
    %84 = vmatprep.subr.mxu0 0.0
    %85 = vmatpush1.msra.mxu0 %v31
    %86 = vmatprep.subr.mxu0 0.0
    %87 = vmatpush1.msra.mxu0 %v32
    %88 = vmatprep.subr.mxu0 0.0
    %89 = vmatpush1.msra.mxu0 %v33
    %90 = vmatprep.subr.mxu0 0.0
    %91 = vmatpush1.msra.mxu0 %v34
    %92 = vmatprep.subr.mxu0 0.0
    %93 = vmatpush1.msra.mxu0 %v35
    %94 = vmatprep.subr.mxu0 0.0
    %95 = vmatpush1.msra.mxu0 %v36
    %96 = vmatprep.subr.mxu0 0.0
    %97 = vmatpush1.msra.mxu0 %v37
    %98 = vmatprep.subr.mxu0 0.0
    %99 = vmatpush1.msra.mxu0 %v38
    %100 = vmatprep.subr.mxu0 0.0
    %101 = vmatpush1.msra.mxu0 %v39
    %102 = vmatprep.subr.mxu0 0.0
    %103 = vmatpush1.msra.mxu0 %v40
    %104 = vmatprep.subr.mxu0 0.0
    %105 = vmatpush1.msra.mxu0 %v41
    %106 = vmatprep.subr.mxu0 0.0
    %107 = vmatpush1.msra.mxu0 %v42
    %108 = vmatprep.subr.mxu0 0.0
    %109 = vmatpush1.msra.mxu0 %v43
    %110 = vmatprep.subr.mxu0 0.0
    %111 = vmatpush1.msra.mxu0 %v44
    %112 = vmatprep.subr.mxu0 0.0
    %113 = vmatpush1.msra.mxu0 %v45
    %114 = vmatprep.subr.mxu0 0.0
    %115 = vmatpush1.msra.mxu0 %v46
    %116 = vmatprep.subr.mxu0 0.0
    %117 = vmatpush1.msra.mxu0 %v47
    %118 = vmatprep.subr.mxu0 0.0
    %119 = vmatpush1.msra.mxu0 %v48
    %120 = vmatprep.mubr.f32.mxu0 %v16
    %121 = vmatmul.mubr.f32.gmra.mrb[0].mxu0 %v15
    %v122 = vpop.f32.mrb[0].mxu0
    %v123 = vadd.f32 %v54, %v122
    %v124 = vpop.f32.mrb[0].mxu0
    %125 = vdwg.mxu0
    %vm126 = vcmask 261120
    %127 = vst.msk [vmem:[#allocation2] sm:$0xff] %vm126, %v123
    // Predicated region
    $region14: #{tpu_custom_call.1} parent=1 // pred_check
      _
    $region15: #{tpu_custom_call.1} parent=1 // pred_check_branch
      %129 = sbr.rel (0) target = $region17
    $region16: #{tpu_custom_call.1} parent=1 // pred_region
      %s131 = ssub.s32 128, 128
      %132 = vsyncadd [#allocation3], %s131
      %s134 = sshll.u32 [#allocation2], 4
      %s135 = int_to_ptr.vmem [resolvable:$true] %s134
      %137 = dma.vmem_to_hbm [thread:$0]  %s135, 128, %s3, [#allocation3]
    $region17: #{tpu_custom_call.1} parent=1 // pred_fallthru
      _
    // Predicated region
    $region18: #{tpu_custom_call.1} parent=1 // pred_check
      _
    $region19: #{tpu_custom_call.1} parent=1 // pred_check_branch
      %139 = sbr.rel (0) target = $region21
    $region20: #{tpu_custom_call.1} parent=1 // pred_region
      %140 = dma.done [#allocation3], 128
    $region21: #{tpu_custom_call.1} parent=1 // pred_fallthru
      _
    %141 = vsyncpa [#allocation3], 1

</llo_original>
